<compile_context>
chip_gen: v5e
topology: v5e:2x2
jax: 0.10.0
libtpu: 0.0.40
codegen_flags: <defaults>
</compile_context>

<pallas_src>
import jax
import jax.numpy as jnp
from jax.experimental import pallas as pl
from jax.experimental.pallas import tpu as pltpu


def _model_kernel(x_ref, w_ref, b_ref, o_ref):
    # x_ref: (B, I, D2) f32 in VMEM  (the only vector operand)
    # w_ref: (O*I,)     f32 in SMEM  (row-major: W[o, k] == w_ref[o*I + k])
    # b_ref: (O,)       f32 in SMEM
    # o_ref: (2*B, O)   f32 in VMEM
    B, I, D2 = x_ref.shape
    O = o_ref.shape[-1]

    x = x_ref[...]                                    # (B, I, D2)

    # mean over the last (lane) axis of x  ==  mean over dim 1 of x.permute(0,2,1)
    # width-D2 reduce as plain VPU adds on lane slices (no XLU cross-lane reduce).
    s = x[:, :, 0:1]
    for d in range(1, D2):                            # static trip count, unrolled
        s = s + x[:, :, d:d + 1]
    mx = s * (1.0 / D2)                               # (B, I, 1)

    # Linear layer on the means, fully on the VPU with SMEM scalars:
    #   lin[b, o] = bias[o] + sum_k mx[b, k] * W[o, k]
    # Columns are placed with a lane-iota select (pure VPU, no concat/relayout).
    lane = jax.lax.broadcasted_iota(jnp.int32, (B, O), 1)
    lin = jnp.zeros((B, O), jnp.float32)
    for o in range(O):                                # O == 2, unrolled
        col = mx[:, 0, :] * w_ref[o * I + 0]          # (B, 1) * SMEM scalar
        for k in range(1, I):                         # I == 2, unrolled
            col = col + mx[:, k, :] * w_ref[o * I + k]
        col = col + b_ref[o]
        lin = jnp.where(lane == o, col, lin)          # write column o

    # Two static row writes into the single (2*B, O) output tile:
    #   rows [0, B)    -> 1.143 + lin
    #   rows [B, 2*B)  -> 0.629 + lin
    o_ref[0:B, :] = 1.143 + lin
    o_ref[B:2 * B, :] = 0.629 + lin


def model_forward(x, weight, bias):
    B, D1, D2 = x.shape
    O, I = weight.shape
    assert D1 == I

    # contiguous flatten (bitcast-cheap); W[o, k] -> w_flat[o*I + k]
    w_flat = weight.reshape(-1)

    out2d = pl.pallas_call(
        _model_kernel,
        out_shape=jax.ShapeDtypeStruct((2 * B, O), jnp.float32),
        in_specs=[
            pl.BlockSpec(memory_space=pltpu.MemorySpace.VMEM),   # x (one tiny tile)
            pl.BlockSpec(memory_space=pltpu.MemorySpace.SMEM),   # weight scalars
            pl.BlockSpec(memory_space=pltpu.MemorySpace.SMEM),   # bias scalars
        ],
        out_specs=pl.BlockSpec(memory_space=pltpu.MemorySpace.VMEM),
        cost_estimate=pl.CostEstimate(
            flops=2 * B * I * D2 + 2 * B * I * O + 4 * B * O,     # ~24
            bytes_accessed=4 * (B * I * D2 + I * O + O + 2 * B * O),
            transcendentals=0,
        ),
    )(x, w_flat, bias)

    return out2d.reshape(2, B, O)


def _reference(x, weight, bias):
    # pure-JAX reference mirroring the torch forward exactly
    v1 = jnp.transpose(x, (0, 2, 1))
    v2 = jnp.einsum("bni,oi->bno", v1, weight) + bias
    x1 = 1.143 + v2
    x2 = 0.629 + v2
    return jnp.stack((jnp.mean(x1, axis=1), jnp.mean(x2, axis=1)), axis=0)


if __name__ == "__main__":
    key = jax.random.PRNGKey(0)
    kx, kw, kb = jax.random.split(key, 3)

    # input consistent with the module: x1 = torch.randn(1, 2, 2)
    x = jax.random.normal(kx, (1, 2, 2), dtype=jnp.float32)

    # deterministic Linear(2, 2) params (synthetic, not a checkpoint)
    weight = jax.random.normal(kw, (2, 2), dtype=jnp.float32) * 0.5
    bias = jax.random.normal(kb, (2,), dtype=jnp.float32) * 0.1

    out = model_forward(x, weight, bias)
    out = jax.block_until_ready(out)

    ref = _reference(x, weight, bias)
    assert out.shape == (2, 1, 2)
    assert jnp.allclose(out, ref, atol=1e-5, rtol=1e-5)

    print("KERNEL_OK")
</pallas_src>

<mosaic_0001>
module attributes {stable_mosaic.version = 11 : i64} {
  func.func @_model_kernel(%arg0: memref<1x2x2xf32, #tpu.memory_space<vmem>>, %arg1: memref<4xf32, #tpu.memory_space<smem>>, %arg2: memref<2xf32, #tpu.memory_space<smem>>, %arg3: memref<2x2xf32, #tpu.memory_space<vmem>>) attributes {dimension_semantics = [], scalar_prefetch = 0 : i64, scratch_operands = 0 : i64, tpu.core_type = #tpu.core_type<tc>} {
    %c0 = arith.constant 0 : index
    %c0_0 = arith.constant 0 : index
    %c0_1 = arith.constant 0 : index
    %0 = vector.load %arg0[%c0, %c0_0, %c0_1] : memref<1x2x2xf32, #tpu.memory_space<vmem>>, vector<1x2x2xf32>
    %1 = vector.extract_strided_slice %0 {offsets = [0, 0, 0], sizes = [1, 2, 1], strides = [1, 1, 1]} : vector<1x2x2xf32> to vector<1x2x1xf32>
    %2 = vector.extract_strided_slice %0 {offsets = [0, 0, 1], sizes = [1, 2, 1], strides = [1, 1, 1]} : vector<1x2x2xf32> to vector<1x2x1xf32>
    %3 = arith.addf %1, %2 : vector<1x2x1xf32>
    %cst = arith.constant 5.000000e-01 : f32
    %4 = vector.broadcast %cst : f32 to vector<1x2x1xf32>
    %5 = arith.mulf %3, %4 : vector<1x2x1xf32>
    %6 = tpu.iota {dimensions = array<i32: 1>} : vector<1x2xi32>
    %cst_2 = arith.constant 0.000000e+00 : f32
    %7 = vector.broadcast %cst_2 : f32 to vector<1x2xf32>
    %8 = vector.extract_strided_slice %5 {offsets = [0, 0, 0], sizes = [1, 1, 1], strides = [1, 1, 1]} : vector<1x2x1xf32> to vector<1x1x1xf32>
    %9 = vector.shape_cast %8 : vector<1x1x1xf32> to vector<1x1xf32>
    %c0_3 = arith.constant 0 : index
    %10 = memref.load %arg1[%c0_3] : memref<4xf32, #tpu.memory_space<smem>>
    %11 = vector.broadcast %10 : f32 to vector<1x1xf32>
    %12 = arith.mulf %9, %11 : vector<1x1xf32>
    %13 = vector.extract_strided_slice %5 {offsets = [0, 1, 0], sizes = [1, 1, 1], strides = [1, 1, 1]} : vector<1x2x1xf32> to vector<1x1x1xf32>
    %14 = vector.shape_cast %13 : vector<1x1x1xf32> to vector<1x1xf32>
    %c1 = arith.constant 1 : index
    %15 = memref.load %arg1[%c1] : memref<4xf32, #tpu.memory_space<smem>>
    %16 = vector.broadcast %15 : f32 to vector<1x1xf32>
    %17 = arith.mulf %14, %16 : vector<1x1xf32>
    %18 = arith.addf %12, %17 : vector<1x1xf32>
    %c0_4 = arith.constant 0 : index
    %19 = memref.load %arg2[%c0_4] : memref<2xf32, #tpu.memory_space<smem>>
    %20 = vector.broadcast %19 : f32 to vector<1x1xf32>
    %21 = arith.addf %18, %20 : vector<1x1xf32>
    %c0_i32 = arith.constant 0 : i32
    %22 = vector.broadcast %c0_i32 : i32 to vector<1x2xi32>
    %23 = arith.cmpi eq, %6, %22 : vector<1x2xi32>
    %24 = vector.shape_cast %21 : vector<1x1xf32> to vector<1x1xf32>
    %25 = vector.broadcast %24 : vector<1x1xf32> to vector<1x2xf32>
    %26 = arith.select %23, %25, %7 : vector<1x2xi1>, vector<1x2xf32>
    %27 = vector.extract_strided_slice %5 {offsets = [0, 0, 0], sizes = [1, 1, 1], strides = [1, 1, 1]} : vector<1x2x1xf32> to vector<1x1x1xf32>
    %28 = vector.shape_cast %27 : vector<1x1x1xf32> to vector<1x1xf32>
    %c2 = arith.constant 2 : index
    %29 = memref.load %arg1[%c2] : memref<4xf32, #tpu.memory_space<smem>>
    %30 = vector.broadcast %29 : f32 to vector<1x1xf32>
    %31 = arith.mulf %28, %30 : vector<1x1xf32>
    %32 = vector.extract_strided_slice %5 {offsets = [0, 1, 0], sizes = [1, 1, 1], strides = [1, 1, 1]} : vector<1x2x1xf32> to vector<1x1x1xf32>
    %33 = vector.shape_cast %32 : vector<1x1x1xf32> to vector<1x1xf32>
    %c3 = arith.constant 3 : index
    %34 = memref.load %arg1[%c3] : memref<4xf32, #tpu.memory_space<smem>>
    %35 = vector.broadcast %34 : f32 to vector<1x1xf32>
    %36 = arith.mulf %33, %35 : vector<1x1xf32>
    %37 = arith.addf %31, %36 : vector<1x1xf32>
    %c1_5 = arith.constant 1 : index
    %38 = memref.load %arg2[%c1_5] : memref<2xf32, #tpu.memory_space<smem>>
    %39 = vector.broadcast %38 : f32 to vector<1x1xf32>
    %40 = arith.addf %37, %39 : vector<1x1xf32>
    %c1_i32 = arith.constant 1 : i32
    %41 = vector.broadcast %c1_i32 : i32 to vector<1x2xi32>
    %42 = arith.cmpi eq, %6, %41 : vector<1x2xi32>
    %43 = vector.shape_cast %40 : vector<1x1xf32> to vector<1x1xf32>
    %44 = vector.broadcast %43 : vector<1x1xf32> to vector<1x2xf32>
    %45 = arith.select %42, %44, %26 : vector<1x2xi1>, vector<1x2xf32>
    %cst_6 = arith.constant 1.143000e+00 : f32
    %46 = vector.broadcast %cst_6 : f32 to vector<1x2xf32>
    %47 = arith.addf %46, %45 : vector<1x2xf32>
    %c0_7 = arith.constant 0 : index
    %c0_8 = arith.constant 0 : index
    %48 = vector.load %arg3[%c0_7, %c0_8] : memref<2x2xf32, #tpu.memory_space<vmem>>, vector<1x2xf32>
    tpu.vector_store %arg3[%c0_7, %c0_8], %47 {strides = array<i32>} : memref<2x2xf32, #tpu.memory_space<vmem>>, vector<1x2xf32>,
    %cst_9 = arith.constant 6.290000e-01 : f32
    %49 = vector.broadcast %cst_9 : f32 to vector<1x2xf32>
    %50 = arith.addf %49, %45 : vector<1x2xf32>
    %c1_10 = arith.constant 1 : index
    %c0_11 = arith.constant 0 : index
    %51 = vector.load %arg3[%c1_10, %c0_11] : memref<2x2xf32, #tpu.memory_space<vmem>>, vector<1x2xf32>
    tpu.vector_store %arg3[%c1_10, %c0_11], %50 {strides = array<i32>} : memref<2x2xf32, #tpu.memory_space<vmem>>, vector<1x2xf32>,
    return
  }
}

</mosaic_0001>

<llo_original>
// kernel: tpu_custom_call.1
$region0: #{tpu_custom_call.1}
  #allocation0 [shape = 'u32[]', space=smem, size = 0x4, offset = 0x4, fixed_abs, tag = 'smem constant byte address 0x4 - core index']
  #allocation1 [shape = 'u32[72,128]{1,0:T(1,128)}', space=vmem, size = 0x9000, scoped, tag = 'internal scratch']
  %s0 = inlined_call_operand.hbm [shape: f32[1,2,2], index: 0, kind: input, shape index: {}]
  %s1 = inlined_call_operand.hbm [shape: f32[4], index: 1, kind: input, shape index: {}]
  %s2 = inlined_call_operand.vmem [shape: f32[2], index: 2, kind: input, shape index: {}]
  %s3 = inlined_call_operand.hbm [shape: f32[2,2], index: 3, kind: output, shape index: {}]
  %s4 = sld [smem:[#allocation0]]
  $region34: #{tpu_custom_call.1} parent=0
    _
  %s6 = ssub.s32 1, %s4
  %s7 = scalar_select 0, %s6, %s4
  $region1: #{tpu_custom_call.1} parent=0
    #allocation2 [shape = 'u8[1024]{0}', space=vmem, size = 0x400, scoped, tag = 'input window, operand 0, single buffered']
    #allocation3 [shape = 's32[1]{0}', space=sflag, size = 0x4, scoped, tag = 'scoped memory for tpu_custom_call.1']
    #allocation4 [shape = 's32[1]{0}', space=sflag, size = 0x4, scoped, tag = 'scoped memory for tpu_custom_call.1']
    #allocation5 [shape = 's32[1]{0}', space=sflag, size = 0x4, scoped, tag = 'scoped memory for tpu_custom_call.1']
    #allocation6 [shape = 's32[1]{0}', space=sflag, size = 0x4, scoped, tag = 'scoped memory for tpu_custom_call.1']
    #allocation7 [shape = 'u8[512]{0}', space=smem, size = 0x200, scoped, tag = 'input window, operand 1, single buffered']
    #allocation8 [shape = 'u8[512]{0}', space=smem, size = 0x200, scoped, tag = 'input window, operand 2, single buffered']
    #allocation9 [shape = 'u8[1024]{0}', space=vmem, size = 0x400, scoped, tag = 'output window, operand 0, single buffered']
    %8 = vsyncpa [#allocation3], 0
    %9 = vsyncpa [#allocation5], 0
    %10 = vsyncpa [#allocation6], 0
    %11 = vsyncpa [#allocation4], 0
    // Predicated region
    $region2: #{tpu_custom_call.1} parent=1 // pred_check
      _
    $region3: #{tpu_custom_call.1} parent=1 // pred_check_branch
      %13 = sbr.rel (0) target = $region5
    $region4: #{tpu_custom_call.1} parent=1 // pred_region
      %15 = vsyncadd [#allocation3], 0
      %s17 = sshll.u32 %s0, 4
      %s18 = int_to_ptr.hbm [resolvable:$true] %s17
      %s19 = sshll.u32 [#allocation2], 4
      %s20 = int_to_ptr.vmem [resolvable:$true] %s19
      %22 = dma.hbm_to_vmem [thread:$0]  %s18, 32, %s20, [#allocation3]
    $region5: #{tpu_custom_call.1} parent=1 // pred_fallthru
      _
    // Predicated region
    $region6: #{tpu_custom_call.1} parent=1 // pred_check
      _
    $region7: #{tpu_custom_call.1} parent=1 // pred_check_branch
      %24 = sbr.rel (0) target = $region9
    $region8: #{tpu_custom_call.1} parent=1 // pred_region
      %26 = vsyncadd [#allocation5], 0
      %s28 = sshll.u32 %s1, 4
      %s29 = int_to_ptr.hbm [resolvable:$true] %s28
      %31 = dma.hbm_to_smem %s29, 16, [#allocation7], [#allocation5]
    $region9: #{tpu_custom_call.1} parent=1 // pred_fallthru
      _
    // Predicated region
    $region10: #{tpu_custom_call.1} parent=1 // pred_check
      _
    $region11: #{tpu_custom_call.1} parent=1 // pred_check_branch
      %33 = sbr.rel (0) target = $region13
    $region12: #{tpu_custom_call.1} parent=1 // pred_region
      %35 = vsyncadd [#allocation6], 0
      %s37 = sshll.u32 %s2, 4
      %s38 = int_to_ptr.vmem [resolvable:$true] %s37
      %40 = dma.vmem_to_smem %s38, 16, [#allocation8], [#allocation6]
    $region13: #{tpu_custom_call.1} parent=1 // pred_fallthru
      _
    // Predicated region
    $region14: #{tpu_custom_call.1} parent=1 // pred_check
      _
    $region15: #{tpu_custom_call.1} parent=1 // pred_check_branch
      %42 = sbr.rel (0) target = $region17
    $region16: #{tpu_custom_call.1} parent=1 // pred_region
      %44 = dma.done [#allocation3], 32
    $region17: #{tpu_custom_call.1} parent=1 // pred_fallthru
      _
    // Predicated region
    $region18: #{tpu_custom_call.1} parent=1 // pred_check
      _
    $region19: #{tpu_custom_call.1} parent=1 // pred_check_branch
      %46 = sbr.rel (0) target = $region21
    $region20: #{tpu_custom_call.1} parent=1 // pred_region
      %48 = dma.done [#allocation5], 16
    $region21: #{tpu_custom_call.1} parent=1 // pred_fallthru
      _
    // Predicated region
    $region22: #{tpu_custom_call.1} parent=1 // pred_check
      _
    $region23: #{tpu_custom_call.1} parent=1 // pred_check_branch
      %50 = sbr.rel (0) target = $region25
    $region24: #{tpu_custom_call.1} parent=1 // pred_region
      %52 = dma.done [#allocation6], 16
    $region25: #{tpu_custom_call.1} parent=1 // pred_fallthru
      _
    %53 = sfence
    %v54 = vld [vmem:[#allocation2] sm:$0x3]
    %56 = vrot.lane.b32.xlu0 %v54, 127
    %v57 = vpop.permute.xlu0 %56
    %v59 = vadd.f32 %v54, %v57
    %v60 = vmul.f32 %v59, 0.5
    %v61 = vlaneseq
    %v62 = vand.u32 %v61, 127
    %s63 = sld [smem:[#allocation7]]
    %v64 = vstv %s63
    %v65 = vmul.f32 %v60, %v64
    %s66 = sld [smem:[#allocation7 + $0x1]]
    %v67 = vstv %s66
    %v68 = vmul.f32 %v60, %v67
    %v70 = vrot.slane %v68, 1
    %v72 = vadd.f32 %v65, %v70
    %s73 = sld [smem:[#allocation8]]
    %v74 = vstv %s73
    %v75 = vadd.f32 %v72, %v74
    %vm76 = vcmp.eq.s32.totalorder %v62, 0
    %78 = vset.pattern.permute.xlu0 0
    %79 = vperm.xlu0 %78, %v75
    %v80 = vpop.permute.xlu0 %79
    %v82 = vsel %vm76, %v80, 0.0
    %s83 = sld [smem:[#allocation7 + $0x2]]
    %v84 = vstv %s83
    %v85 = vmul.f32 %v60, %v84
    %s86 = sld [smem:[#allocation7 + $0x3]]
    %v87 = vstv %s86
    %v88 = vmul.f32 %v60, %v87
    %v90 = vrot.slane %v88, 1
    %v92 = vadd.f32 %v85, %v90
    %s93 = sld [smem:[#allocation8 + $0x1]]
    %v94 = vstv %s93
    %v95 = vadd.f32 %v92, %v94
    %vm96 = vcmp.eq.s32.totalorder %v62, 1
    %98 = vset.pattern.permute.xlu0 0
    %99 = vperm.xlu0 %98, %v95
    %v100 = vpop.permute.xlu0 %99
    %v102 = vsel %vm96, %v100, %v82
    %v103 = vadd.f32 %v102, 1.143
    %vm104 = vcmask 8192
    %105 = vst.msk [vmem:[#allocation9] sm:$0x1] %vm104, %v103
    %v106 = vadd.f32 %v102, 0.629
    %107 = vst.msk [vmem:[#allocation9 + $0x1] sm:$0x1] %vm104, %v106
    // Predicated region
    $region26: #{tpu_custom_call.1} parent=1 // pred_check
      _
    $region27: #{tpu_custom_call.1} parent=1 // pred_check_branch
      %109 = sbr.rel (0) target = $region29
    $region28: #{tpu_custom_call.1} parent=1 // pred_region
      %111 = vsyncadd [#allocation4], 0
      %s113 = sshll.u32 [#allocation9], 4
      %s114 = int_to_ptr.vmem [resolvable:$true] %s113
      %s115 = sshll.u32 %s3, 4
      %s116 = int_to_ptr.hbm [resolvable:$true] %s115
      %118 = dma.vmem_to_hbm [thread:$0]  %s114, 32, %s116, [#allocation4]
    $region29: #{tpu_custom_call.1} parent=1 // pred_fallthru
      _
    // Predicated region
    $region30: #{tpu_custom_call.1} parent=1 // pred_check
      _
    $region31: #{tpu_custom_call.1} parent=1 // pred_check_branch
      %120 = sbr.rel (0) target = $region33
    $region32: #{tpu_custom_call.1} parent=1 // pred_region
      %122 = dma.done [#allocation4], 32
    $region33: #{tpu_custom_call.1} parent=1 // pred_fallthru
      _
    %123 = vsyncpa [#allocation3], 1
    %124 = vsyncpa [#allocation4], 1
    %125 = vsyncpa [#allocation5], 1
    %126 = vsyncpa [#allocation6], 1

</llo_original>
